<compile_context>
chip_gen: v7x
topology: tpu7x:2x2x1
jax: 0.10.0
libtpu: 0.0.40
codegen_flags: <defaults>
</compile_context>

<pallas_src>
import functools
import math

import jax
import jax.numpy as jnp
from jax.experimental import pallas as pl
from jax.experimental.pallas import tpu as pltpu


# ---------------------------------------------------------------------------
# hardware-aware knobs
# ---------------------------------------------------------------------------
def _vmem_limit_bytes():
    kind = ""
    try:
        kind = jax.devices()[0].device_kind.lower()
    except Exception:
        pass
    if "v7" in kind or "7x" in kind:
        return 40 * 1024 * 1024          # v7x: 64 MiB physical, leave scratch headroom
    if "v5" in kind or "v6" in kind:
        return 100 * 1024 * 1024         # 128 MiB physical -> allow bigger tiles
    return 48 * 1024 * 1024              # conservative default elsewhere


@functools.lru_cache(maxsize=None)
def _single_buffer_supported():
    """Probe (compile + run) whether pipeline_mode=pl.Buffered(1) works here."""
    def _probe(x_ref, o_ref):
        o_ref[...] = x_ref[...] + 1.0
    try:
        spec = pl.BlockSpec((8, 128), lambda i: (0, 0), pipeline_mode=pl.Buffered(1))
        out = pl.pallas_call(
            _probe,
            out_shape=jax.ShapeDtypeStruct((8, 128), jnp.float32),
            grid=(2,),
            in_specs=[spec],
            out_specs=pl.BlockSpec((8, 128), lambda i: (0, 0)),
        )(jnp.zeros((8, 128), jnp.float32))
        jax.block_until_ready(out)
        return True
    except Exception:
        return False


def _const_spec(p):
    """VMEM-resident block (constant index_map); single-buffered when supported."""
    nd = p.ndim
    imap = lambda *_, _nd=nd: (0,) * _nd
    if _single_buffer_supported():
        return pl.BlockSpec(p.shape, imap, pipeline_mode=pl.Buffered(1))
    return pl.BlockSpec(p.shape, imap)


def _pick_batch_tile(batch, seq_pad, hidden, mlp_dim, heads, vmem_limit):
    # rough f32 live-intermediate bytes per batch element inside the block kernel
    per_elem = 4 * seq_pad * (4 * hidden + mlp_dim + heads * seq_pad + 3 * hidden)
    cap = max(1, min(8, (vmem_limit // 4) // max(per_elem, 1)))
    bt = 1
    for cand in range(1, min(batch, cap) + 1):
        if batch % cand == 0:
            bt = cand
    return bt


# ---------------------------------------------------------------------------
# helpers used *inside* kernels
# ---------------------------------------------------------------------------
def _layernorm(v, scale, bias, eps=1e-6):
    # f32 statistics; eps=1e-6 matches LayerNorm(..., eps=1e-06) in the module
    mu = jnp.mean(v, axis=-1, keepdims=True)
    var = jnp.mean((v - mu) ** 2, axis=-1, keepdims=True)
    return (v - mu) * jax.lax.rsqrt(var + eps) * scale + bias


def _mm_bf16(a_f32, w_bf16, b_f32):
    # bf16 MXU matmul, f32 accumulation, f32 bias add
    return jnp.dot(a_f32.astype(jnp.bfloat16), w_bf16,
                   preferred_element_type=jnp.float32) + b_f32


# ---------------------------------------------------------------------------
# Kernel 1: fused embedding (patch conv-as-matmul + cls token + pos emb + pad)
# ---------------------------------------------------------------------------
def embed_kernel(patches_ref, w_ref, b_ref, clspos_ref, o_ref):
    bt, npatch, kdim = patches_ref.shape
    hidden = w_ref.shape[1]
    p2 = patches_ref[...].reshape(bt * npatch, kdim)              # bf16 activations
    pe = jnp.dot(p2, w_ref[...], preferred_element_type=jnp.float32) + b_ref[...]
    pe = pe.reshape(bt, npatch, hidden)
    cp = clspos_ref[...]                                          # (1, seq_pad, H) f32
    # zero everything (padded rows must be finite zeros), then write real rows
    o_ref[...] = jnp.zeros(o_ref.shape, o_ref.dtype)
    o_ref[:, 0:1, :] = jnp.broadcast_to(cp[:, 0:1, :],
                                        (bt, 1, hidden)).astype(o_ref.dtype)
    o_ref[:, 1:1 + npatch, :] = (pe + cp[:, 1:1 + npatch, :]).astype(o_ref.dtype)


def run_patch_embed(patches3d, w, b, clspos, *, bt, seq_pad, out_dtype, vmem_limit):
    batch, npatch, kdim = patches3d.shape
    hidden = w.shape[1]
    flops = 2 * batch * npatch * kdim * hidden
    bytes_acc = (int(patches3d.size) * 2 + int(w.size) * 2 + int(b.size) * 4
                 + int(clspos.size) * 4 + batch * seq_pad * hidden * 2)
    return pl.pallas_call(
        embed_kernel,
        out_shape=jax.ShapeDtypeStruct((batch, seq_pad, hidden), out_dtype),
        grid=(batch // bt,),
        in_specs=[pl.BlockSpec((bt, npatch, kdim), lambda i: (i, 0, 0)),
                  _const_spec(w), _const_spec(b), _const_spec(clspos)],
        out_specs=pl.BlockSpec((bt, seq_pad, hidden), lambda i: (i, 0, 0)),
        compiler_params=pltpu.CompilerParams(
            dimension_semantics=("parallel",),
            vmem_limit_bytes=vmem_limit),
        cost_estimate=pl.CostEstimate(flops=int(flops), transcendentals=0,
                                      bytes_accessed=int(bytes_acc)),
    )(patches3d, w, b, clspos)


# ---------------------------------------------------------------------------
# Kernel 2: one SkinMotionBlock (pre-LN MHSA + MLP, residuals), Bt elements per
#           grid step.  Optionally fuses the final encoder LayerNorm + crop.
# ---------------------------------------------------------------------------
def encoder_block_kernel(*refs, num_heads, fuse_final_ln, out_seq):
    ctx_scr = refs[-1]                    # VMEM scratch (bt*seq, hidden) f32
    o_ref = refs[-2]
    if fuse_final_ln:
        (mask_ref, x_ref, ln1s, ln1b, wqkv, bqkv, wo, bo,
         ln2s, ln2b, w1, b1, w2, b2, flns, flnb) = refs[:-2]
    else:
        (mask_ref, x_ref, ln1s, ln1b, wqkv, bqkv, wo, bo,
         ln2s, ln2b, w1, b1, w2, b2) = refs[:-2]
        flns = flnb = None

    bt, seq, hidden = x_ref.shape
    head_dim = hidden // num_heads
    scale = 1.0 / math.sqrt(head_dim)

    x = x_ref[...].astype(jnp.float32).reshape(bt * seq, hidden)
    mask = mask_ref[...].reshape(1, 1, seq)          # additive key mask, f32

    # ---- attention sub-block ----
    residual = x
    xn = _layernorm(x, ln1s[...], ln1b[...])
    qkv = _mm_bf16(xn, wqkv[...], bqkv[...])         # fused Q|K|V: (bt*seq, 3H) f32

    # small static loop over batch elements; heads stay batched in 3-D einsums
    # (proven Mosaic dot_general form; big matmuls above/below keep M = bt*seq)
    for b in range(bt):
        rows = slice(b * seq, (b + 1) * seq)

        def to_heads(t):                             # (seq, H) -> (heads, seq, hd)
            return (t.reshape(seq, num_heads, head_dim)
                     .transpose(1, 0, 2).astype(jnp.bfloat16))

        qh = to_heads(qkv[rows, 0:hidden] * scale)   # scale folded into q
        kh = to_heads(qkv[rows, hidden:2 * hidden])
        vh = to_heads(qkv[rows, 2 * hidden:3 * hidden])

        sc = jnp.einsum("nsd,ntd->nst", qh, kh,
                        preferred_element_type=jnp.float32)       # (heads, S, S)
        sc = sc + mask                                            # mask padded keys
        sc = sc - jnp.max(sc, axis=-1, keepdims=True)
        e = jnp.exp(sc)
        p = e * pl.reciprocal(jnp.sum(e, axis=-1, keepdims=True), approx=True)
        ctx = jnp.einsum("nst,ntd->nsd", p.astype(jnp.bfloat16), vh,
                         preferred_element_type=jnp.float32)      # (heads, S, hd)
        ctx_scr[rows, :] = ctx.transpose(1, 0, 2).reshape(seq, hidden)

    attn_out = _mm_bf16(ctx_scr[...], wo[...], bo[...])
    x = attn_out + residual                          # attn/proj dropout = identity

    # ---- MLP sub-block ----
    residual = x
    xn = _layernorm(x, ln2s[...], ln2b[...])
    h = _mm_bf16(xn, w1[...], b1[...])
    h = jax.nn.gelu(h, approximate=False)            # exact (erf) GELU, matches torch
    x = _mm_bf16(h, w2[...], b2[...]) + residual

    if fuse_final_ln:                                # fused encoder_norm (last layer)
        x = _layernorm(x, flns[...], flnb[...])

    x = x.reshape(bt, seq, hidden)
    o_ref[...] = x[:, :out_seq, :].astype(o_ref.dtype)


def run_encoder_block(x3d, layer_params, mask, *, num_heads, bt,
                      final_ln_params=None, out_seq=None,
                      out_dtype=jnp.bfloat16, vmem_limit=None):
    batch, seq_pad, hidden = x3d.shape
    if out_seq is None:
        out_seq = seq_pad
    fuse = final_ln_params is not None
    extra = tuple(final_ln_params) if fuse else ()
    operands = (mask, x3d) + tuple(layer_params) + extra

    kernel = functools.partial(encoder_block_kernel, num_heads=num_heads,
                               fuse_final_ln=fuse, out_seq=out_seq)

    in_specs = [_const_spec(mask),
                pl.BlockSpec((bt, seq_pad, hidden), lambda i: (i, 0, 0))]
    in_specs += [_const_spec(p) for p in layer_params]
    in_specs += [_const_spec(p) for p in extra]

    mlp_dim = layer_params[8].shape[1]
    flops = batch * (2 * seq_pad * hidden * 3 * hidden
                     + 4 * seq_pad * seq_pad * hidden
                     + 2 * seq_pad * hidden * hidden
                     + 4 * seq_pad * hidden * mlp_dim)
    transc = batch * (num_heads * seq_pad * seq_pad + seq_pad * mlp_dim)
    bytes_acc = sum(int(p.size) * p.dtype.itemsize for p in operands) \
        + batch * out_seq * hidden * jnp.dtype(out_dtype).itemsize

    return pl.pallas_call(
        kernel,
        out_shape=jax.ShapeDtypeStruct((batch, out_seq, hidden), out_dtype),
        grid=(batch // bt,),
        in_specs=in_specs,
        out_specs=pl.BlockSpec((bt, out_seq, hidden), lambda i: (i, 0, 0)),
        scratch_shapes=[pltpu.VMEM((bt * seq_pad, hidden), jnp.float32)],
        compiler_params=pltpu.CompilerParams(
            dimension_semantics=("parallel",),
            vmem_limit_bytes=vmem_limit),
        cost_estimate=pl.CostEstimate(flops=int(flops), transcendentals=int(transc),
                                      bytes_accessed=int(bytes_acc)),
    )(*operands)


# ---------------------------------------------------------------------------
# Kernel 3: standalone LayerNorm (+crop) — only used if the encoder has 0 layers
# ---------------------------------------------------------------------------
def layernorm_kernel(x_ref, s_ref, b_ref, o_ref, *, out_seq):
    bt, seq, hidden = x_ref.shape
    x = x_ref[...].astype(jnp.float32).reshape(bt * seq, hidden)
    y = _layernorm(x, s_ref[...], b_ref[...]).reshape(bt, seq, hidden)
    o_ref[...] = y[:, :out_seq, :].astype(o_ref.dtype)


def run_layernorm(x3d, scale, bias, *, bt, out_seq, vmem_limit):
    batch, seq_pad, hidden = x3d.shape
    return pl.pallas_call(
        functools.partial(layernorm_kernel, out_seq=out_seq),
        out_shape=jax.ShapeDtypeStruct((batch, out_seq, hidden), jnp.float32),
        grid=(batch // bt,),
        in_specs=[pl.BlockSpec((bt, seq_pad, hidden), lambda i: (i, 0, 0)),
                  _const_spec(scale), _const_spec(bias)],
        out_specs=pl.BlockSpec((bt, out_seq, hidden), lambda i: (i, 0, 0)),
        compiler_params=pltpu.CompilerParams(
            dimension_semantics=("parallel",),
            vmem_limit_bytes=vmem_limit),
    )(x3d, scale, bias)


# ---------------------------------------------------------------------------
# Glue: patch extraction + embeddings + encoder stack
# ---------------------------------------------------------------------------
def extract_patches(x, p):
    # x: (B, C, H, W) NCHW -> (B, gh*gw, C*p*p); flatten order (c, i, j) matches
    # the flattened OIHW conv weight so that patches @ W == Conv2d(stride=p).
    b, c, h, w = x.shape
    gh, gw = h // p, w // p
    xp = x.reshape(b, c, gh, p, gw, p)
    xp = xp.transpose(0, 2, 4, 1, 3, 5)              # (B, gh, gw, C, p, p)
    return xp.reshape(b, gh * gw, c * p * p)


def skin_motion_transformer_forward(x, params, cfg):
    batch = x.shape[0]
    patch, hidden, heads = cfg["patch"], cfg["hidden"], cfg["heads"]
    n_patches = (x.shape[2] // patch) * (x.shape[3] // patch)
    seq = n_patches + 1
    seq_pad = ((seq + 15) // 16) * 16                # bf16 packs (16,128) per vreg
    vmem_limit = _vmem_limit_bytes()
    mlp_dim = params["layers"][0][8].shape[1] if params["layers"] else hidden
    bt = _pick_batch_tile(batch, seq_pad, hidden, mlp_dim, heads, vmem_limit)

    # --- embeddings (patch conv + cls token + pos emb + padding, one kernel) ---
    patches = extract_patches(x, patch).astype(jnp.bfloat16)     # bf16 input DMA
    # clspos: row 0 = cls_token + pos[0], rows 1..NP = pos[1..NP], padded rows = 0
    clspos = jnp.zeros((1, seq_pad, hidden), jnp.float32)
    clspos = clspos.at[:, 0, :].set(params["cls_token"][0, 0] + params["pos_emb"][0, 0])
    clspos = clspos.at[:, 1:seq, :].set(params["pos_emb"][0, 1:seq])
    h = run_patch_embed(patches, params["w_patch"], params["b_patch"], clspos,
                        bt=bt, seq_pad=seq_pad, out_dtype=jnp.bfloat16,
                        vmem_limit=vmem_limit)                    # (B, seq_pad, H) bf16
    # embeddings dropout = identity (inference)

    # additive key mask: 0 for real tokens, -1e30 for padded keys (kept in f32)
    mask = jnp.where(jnp.arange(seq_pad) < seq, 0.0, -1e30).astype(jnp.float32)
    mask = mask.reshape(1, seq_pad)

    # --- encoder ---
    n_layers = len(params["layers"])
    if n_layers == 0:
        h = run_layernorm(h, params["enc_norm_s"], params["enc_norm_b"],
                          bt=bt, out_seq=seq, vmem_limit=vmem_limit)
    else:
        for i, lp in enumerate(params["layers"]):
            last = (i == n_layers - 1)
            h = run_encoder_block(
                h, lp, mask, num_heads=heads, bt=bt,
                final_ln_params=((params["enc_norm_s"], params["enc_norm_b"])
                                 if last else None),
                out_seq=(seq if last else seq_pad),
                out_dtype=(jnp.float32 if last else jnp.bfloat16),
                vmem_limit=vmem_limit)
    encoded = h                                      # (B, seq, H) f32, already cropped
    attn_weights = []                                # vis=False
    features = None                                  # hybrid=False
    return encoded, attn_weights, features


def skin_motion_vision_transformer_forward(x, params, cfg):
    encoded, attn_weights, features = skin_motion_transformer_forward(x, params, cfg)
    cls_out = encoded[:, 0:1, :]                     # x[:, 0, :].unsqueeze(1)
    return cls_out, encoded, attn_weights, features


# ---------------------------------------------------------------------------
# deterministic parameter initialization (synthetic; shapes from __init__)
# ---------------------------------------------------------------------------
def init_params(key, *, in_channels, patch, hidden, mlp_dim, heads, layers, n_patches):
    k = [key]

    def nxt():
        k[0], sub = jax.random.split(k[0])
        return sub

    def w32(shape, std=0.02):
        return (std * jax.random.normal(nxt(), shape)).astype(jnp.float32)

    def wbf(shape, std=0.02):
        return (std * jax.random.normal(nxt(), shape)).astype(jnp.bfloat16)

    params = {
        # Conv2d(in_channels, hidden, kernel=patch, stride=patch) as a matmul
        "w_patch": wbf((in_channels * patch * patch, hidden)),
        "b_patch": w32((1, hidden), 0.01),
        "cls_token": jax.random.normal(nxt(), (1, 1, hidden), jnp.float32),
        "pos_emb": jnp.zeros((1, n_patches + 1, hidden), jnp.float32),
        "enc_norm_s": jnp.ones((1, hidden), jnp.float32),
        "enc_norm_b": jnp.zeros((1, hidden), jnp.float32),
        "layers": [],
    }
    for _ in range(layers):
        lp = (
            jnp.ones((1, hidden), jnp.float32),      # ln1 scale
            jnp.zeros((1, hidden), jnp.float32),     # ln1 bias
            wbf((hidden, 3 * hidden)),               # fused Wq|Wk|Wv (x @ W + b form)
            w32((1, 3 * hidden), 0.01),              # fused bq|bk|bv
            wbf((hidden, hidden)), w32((1, hidden), 0.01),    # out proj
            jnp.ones((1, hidden), jnp.float32),      # ln2 scale
            jnp.zeros((1, hidden), jnp.float32),     # ln2 bias
            wbf((hidden, mlp_dim)), w32((1, mlp_dim), 1e-6),  # fc1
            wbf((mlp_dim, hidden)), w32((1, hidden), 1e-6),   # fc2
        )
        params["layers"].append(lp)
    return params


# ---------------------------------------------------------------------------
if __name__ == "__main__":
    # small config consistent with the module: img 16x16, patch 8 -> 4 patches + cls
    B, C, IMG, P = 2, 3, 16, 8
    HID, HEADS, MLP, LAYERS = 32, 4, 64, 2
    NP = (IMG // P) * (IMG // P)

    cfg = {"patch": P, "hidden": HID, "heads": HEADS, "layers": LAYERS}

    root = jax.random.PRNGKey(0)
    kx, kp = jax.random.split(root)
    x = jax.random.normal(kx, (B, C, IMG, IMG), jnp.float32)
    params = init_params(kp, in_channels=C, patch=P, hidden=HID, mlp_dim=MLP,
                         heads=HEADS, layers=LAYERS, n_patches=NP)

    cls_out, encoded, attn_weights, features = skin_motion_vision_transformer_forward(
        x, params, cfg)
    cls_out = jax.block_until_ready(cls_out)
    encoded = jax.block_until_ready(encoded)

    assert cls_out.shape == (B, 1, HID)              # SkinMotionVisionTransformer output
    assert encoded.shape == (B, NP + 1, HID)
    assert encoded.dtype == jnp.float32
    assert bool(jnp.all(jnp.isfinite(cls_out)))
    assert bool(jnp.all(jnp.isfinite(encoded)))
    assert attn_weights == [] and features is None   # vis=False, hybrid=False
    print("KERNEL_OK")
</pallas_src>

<mosaic_0001>
module attributes {stable_mosaic.version = 11 : i64} {
  func.func @_probe(%arg0: i32, %arg1: memref<8x128xf32, #tpu.memory_space<vmem>>, %arg2: memref<8x128xf32, #tpu.memory_space<vmem>>) attributes {dimension_semantics = [#tpu.dimension_semantics<arbitrary>], iteration_bounds = array<i64: 2>, scalar_prefetch = 0 : i64, scratch_operands = 0 : i64, tpu.core_type = #tpu.core_type<tc>, window_params = [{pipeline_mode = #tpu.pipeline_mode<synchronous>, transform_indices = @transform_0, window_bounds = array<i64: 8, 128>}, {pipeline_mode = #tpu.pipeline_mode<synchronous>, transform_indices = @transform_1, window_bounds = array<i64: 8, 128>}]} {
    %c0 = arith.constant 0 : index
    %c0_0 = arith.constant 0 : index
    %0 = vector.load %arg1[%c0, %c0_0] : memref<8x128xf32, #tpu.memory_space<vmem>>, vector<8x128xf32>
    %cst = arith.constant 1.000000e+00 : f32
    %1 = vector.broadcast %cst : f32 to vector<8x128xf32>
    %2 = arith.addf %0, %1 : vector<8x128xf32>
    %c0_1 = arith.constant 0 : index
    %c0_2 = arith.constant 0 : index
    %3 = vector.load %arg2[%c0_1, %c0_2] : memref<8x128xf32, #tpu.memory_space<vmem>>, vector<8x128xf32>
    tpu.vector_store %arg2[%c0_1, %c0_2], %2 {strides = array<i32>} : memref<8x128xf32, #tpu.memory_space<vmem>>, vector<8x128xf32>,
    return
  }
  func.func @transform_0(%arg0: i32) -> (i32, i32) {
    %c0_i32 = arith.constant 0 : i32
    %c0_i32_0 = arith.constant 0 : i32
    %c0_i32_1 = arith.constant 0 : i32
    return %c0_i32, %c0_i32_0 : i32, i32
  }
  func.func @transform_1(%arg0: i32) -> (i32, i32) {
    %c0_i32 = arith.constant 0 : i32
    %c0_i32_0 = arith.constant 0 : i32
    %c0_i32_1 = arith.constant 0 : i32
    return %c0_i32, %c0_i32_0 : i32, i32
  }
}

module attributes {stable_mosaic.version = 11 : i64} {
  func.func @embed_kernel(%arg0: i32, %arg1: memref<2x4x192xbf16, #tpu.memory_space<vmem>>, %arg2: memref<192x32xbf16, #tpu.memory_space<vmem>>, %arg3: memref<1x32xf32, #tpu.memory_space<vmem>>, %arg4: memref<1x16x32xf32, #tpu.memory_space<vmem>>, %arg5: memref<2x16x32xbf16, #tpu.memory_space<vmem>>) attributes {dimension_semantics = [#tpu.dimension_semantics<parallel>], iteration_bounds = array<i64: 1>, scalar_prefetch = 0 : i64, scratch_operands = 0 : i64, tpu.core_type = #tpu.core_type<tc>, window_params = [{transform_indices = @transform_0, window_bounds = array<i64: 2, 4, 192>}, {pipeline_mode = #tpu.pipeline_mode<synchronous>, transform_indices = @transform_1, window_bounds = array<i64: 192, 32>}, {pipeline_mode = #tpu.pipeline_mode<synchronous>, transform_indices = @transform_2, window_bounds = array<i64: 1, 32>}, {pipeline_mode = #tpu.pipeline_mode<synchronous>, transform_indices = @transform_3, window_bounds = array<i64: 1, 16, 32>}, {transform_indices = @transform_4, window_bounds = array<i64: 2, 16, 32>}]} {
    %c0 = arith.constant 0 : index
    %c0_0 = arith.constant 0 : index
    %c0_1 = arith.constant 0 : index
    %0 = vector.load %arg1[%c0, %c0_0, %c0_1] : memref<2x4x192xbf16, #tpu.memory_space<vmem>>, vector<2x4x192xbf16>
    %1 = vector.shape_cast %0 : vector<2x4x192xbf16> to vector<8x192xbf16>
    %c0_2 = arith.constant 0 : index
    %c0_3 = arith.constant 0 : index
    %2 = vector.load %arg2[%c0_2, %c0_3] : memref<192x32xbf16, #tpu.memory_space<vmem>>, vector<192x32xbf16>
    %cst = arith.constant dense<0.000000e+00> : vector<8x32xf32>
    %3 = tpu.matmul %1, %2, %cst {dimension_numbers = #tpu.dot_dimension_numbers<[1], [0], [0], [1], [0, 0, 1, 1], [], []>} : vector<8x192xbf16>, vector<192x32xbf16>, vector<8x32xf32> -> vector<8x32xf32>
    %c0_4 = arith.constant 0 : index
    %c0_5 = arith.constant 0 : index
    %4 = vector.load %arg3[%c0_4, %c0_5] : memref<1x32xf32, #tpu.memory_space<vmem>>, vector<1x32xf32>
    %5 = vector.broadcast %4 : vector<1x32xf32> to vector<8x32xf32>
    %6 = arith.addf %3, %5 : vector<8x32xf32>
    %7 = vector.shape_cast %6 : vector<8x32xf32> to vector<2x4x32xf32>
    %c0_6 = arith.constant 0 : index
    %c0_7 = arith.constant 0 : index
    %c0_8 = arith.constant 0 : index
    %8 = vector.load %arg4[%c0_6, %c0_7, %c0_8] : memref<1x16x32xf32, #tpu.memory_space<vmem>>, vector<1x16x32xf32>
    %cst_9 = arith.constant 0.000000e+00 : bf16
    %9 = vector.broadcast %cst_9 : bf16 to vector<2x16x32xbf16>
    %c0_10 = arith.constant 0 : index
    %c0_11 = arith.constant 0 : index
    %c0_12 = arith.constant 0 : index
    %10 = vector.load %arg5[%c0_10, %c0_11, %c0_12] : memref<2x16x32xbf16, #tpu.memory_space<vmem>>, vector<2x16x32xbf16>
    tpu.vector_store %arg5[%c0_10, %c0_11, %c0_12], %9 {strides = array<i32>} : memref<2x16x32xbf16, #tpu.memory_space<vmem>>, vector<2x16x32xbf16>,
    %11 = vector.extract_strided_slice %8 {offsets = [0, 0, 0], sizes = [1, 1, 32], strides = [1, 1, 1]} : vector<1x16x32xf32> to vector<1x1x32xf32>
    %12 = vector.shape_cast %11 : vector<1x1x32xf32> to vector<1x1x32xf32>
    %13 = vector.broadcast %12 : vector<1x1x32xf32> to vector<2x1x32xf32>
    %14 = arith.truncf %13 : vector<2x1x32xf32> to vector<2x1x32xbf16>
    %c0_13 = arith.constant 0 : index
    %c0_14 = arith.constant 0 : index
    %c0_15 = arith.constant 0 : index
    %15 = vector.load %arg5[%c0_13, %c0_14, %c0_15] : memref<2x16x32xbf16, #tpu.memory_space<vmem>>, vector<2x1x32xbf16>
    tpu.vector_store %arg5[%c0_13, %c0_14, %c0_15], %14 {strides = array<i32>} : memref<2x16x32xbf16, #tpu.memory_space<vmem>>, vector<2x1x32xbf16>,
    %16 = vector.extract_strided_slice %8 {offsets = [0, 1, 0], sizes = [1, 4, 32], strides = [1, 1, 1]} : vector<1x16x32xf32> to vector<1x4x32xf32>
    %17 = vector.broadcast %16 : vector<1x4x32xf32> to vector<2x4x32xf32>
    %18 = arith.addf %7, %17 : vector<2x4x32xf32>
    %19 = arith.truncf %18 : vector<2x4x32xf32> to vector<2x4x32xbf16>
    %c0_16 = arith.constant 0 : index
    %c1 = arith.constant 1 : index
    %c0_17 = arith.constant 0 : index
    %20 = vector.load %arg5[%c0_16, %c1, %c0_17] : memref<2x16x32xbf16, #tpu.memory_space<vmem>>, vector<2x4x32xbf16>
    tpu.vector_store %arg5[%c0_16, %c1, %c0_17], %19 {strides = array<i32>} : memref<2x16x32xbf16, #tpu.memory_space<vmem>>, vector<2x4x32xbf16>,
    return
  }
  func.func @transform_0(%arg0: i32) -> (i32, i32, i32) {
    %c0_i32 = arith.constant 0 : i32
    %c0_i32_0 = arith.constant 0 : i32
    %c0_i32_1 = arith.constant 0 : i32
    return %arg0, %c0_i32, %c0_i32_0 : i32, i32, i32
  }
  func.func @transform_1(%arg0: i32) -> (i32, i32) {
    %c0_i32 = arith.constant 0 : i32
    %c0_i32_0 = arith.constant 0 : i32
    %c0_i32_1 = arith.constant 0 : i32
    return %c0_i32, %c0_i32_0 : i32, i32
  }
  func.func @transform_2(%arg0: i32) -> (i32, i32) {
    %c0_i32 = arith.constant 0 : i32
    %c0_i32_0 = arith.constant 0 : i32
    %c0_i32_1 = arith.constant 0 : i32
    return %c0_i32, %c0_i32_0 : i32, i32
  }
  func.func @transform_3(%arg0: i32) -> (i32, i32, i32) {
    %c0_i32 = arith.constant 0 : i32
    %c0_i32_0 = arith.constant 0 : i32
    %c0_i32_1 = arith.constant 0 : i32
    %c0_i32_2 = arith.constant 0 : i32
    return %c0_i32, %c0_i32_0, %c0_i32_1 : i32, i32, i32
  }
  func.func @transform_4(%arg0: i32) -> (i32, i32, i32) {
    %c0_i32 = arith.constant 0 : i32
    %c0_i32_0 = arith.constant 0 : i32
    %c0_i32_1 = arith.constant 0 : i32
    return %arg0, %c0_i32, %c0_i32_0 : i32, i32, i32
  }
}

</mosaic_0001>

<llo_original>
// kernel: tpu_custom_call.1
$region0: #{tpu_custom_call.1}
  #allocation0 [shape = 'u32[]', space=smem, size = 0x4, offset = 0x4, fixed_abs, tag = 'smem constant byte address 0x4 - core index']
  #allocation1 [shape = 'u32[144,128]{1,0:T(1,128)}', space=vmem, size = 0x12000, scoped, tag = 'internal scratch']
  %s0 = inlined_call_operand.hbm [shape: f32[8,128], index: 0, kind: input, shape index: {}]
  %s1 = inlined_call_operand.hbm [shape: f32[8,128], index: 1, kind: output, shape index: {}]
  %s2 = sld [smem:[#allocation0]]
  $region41: #{tpu_custom_call.1} parent=0
    _
  %s4 = ssub.s32 1, %s2
  %s5 = scalar_select 0, %s4, %s2
  $region1: #{tpu_custom_call.1} parent=0
    #allocation2 [shape = 'u8[4096]{0}', space=vmem, size = 0x1000, scoped, tag = 'input window, operand 0, single buffered']
    #allocation3 [shape = 's32[2]{0}', space=sflag, size = 0x8, scoped, tag = 'scoped memory for tpu_custom_call.1']
    #allocation4 [shape = 's32[2]{0}', space=sflag, size = 0x8, scoped, tag = 'scoped memory for tpu_custom_call.1']
    #allocation5 [shape = 'u8[4096]{0}', space=vmem, size = 0x1000, scoped, tag = 'output window, operand 0, single buffered']
    %6 = vsyncpa [#allocation3], 0
    %7 = vsyncpa [#allocation4], 0
    loop: start=0, step=1, limit=4
    $region2: #{tpu_custom_call.1} parent=1 // loop_pre_header
      _
    $region3: #{tpu_custom_call.1} parent=1 // loop_header
      %s9 = sphi 0, %s13
      %p10 = scmp.ge.s32.totalorder %s9, 4
      %s17 = sphi 0, %s17
      %s19 = sphi 0, %s17
      %s20 = sphi 0, %s19
      %s34 = sphi 0, %s20
      %s38 = sphi 0, %s38
      %s40 = sphi 0, %s38
      %s41 = sphi 0, %s40
      %s55 = sphi 0, %s41
    $region4: #{tpu_custom_call.1} parent=1 // loop_header_branch
      %12 = sbr.rel (%p10) target = $region8
    $region5: #{tpu_custom_call.1} parent=1 // loop_body
      %s14 = ssub.s32 %s9, 1
      %s15 = ssub.s32 %s9, 2
      %s16 = sadd.s32 %s9, 1
      %s18 = sadd.s32 %s17, 1
      %p21 = scmp.eq.s32.totalorder %s9, 1
      %p22 = scmp.ne.s32.totalorder %s17, %s19
      %p23 = scmp.eq.s32.totalorder %s9, 0
      %p24 = por %p22, %p23
      %p25 = scmp.ne.s32.totalorder %s17, %s19
      %p26 = scmp.eq.s32.totalorder %s14, 1
      %p27 = por %p25, %p26
      %p28 = scmp.ne.s32.totalorder %s19, %s20
      %p29 = scmp.eq.s32.totalorder %s14, 0
      %p30 = por %p28, %p29
      %p31 = scmp.ne.s32.totalorder %s19, %s20
      %p32 = scmp.eq.s32.totalorder %s15, 1
      %p33 = por %p31, %p32
      %p35 = scmp.ne.s32.totalorder %s20, %s34
      %p36 = scmp.eq.s32.totalorder %s15, 0
      %p37 = por %p35, %p36
      %s39 = sadd.s32 %s38, 1
      %p42 = scmp.eq.s32.totalorder %s9, 1
      %p43 = scmp.ne.s32.totalorder %s38, %s40
      %p44 = scmp.eq.s32.totalorder %s9, 0
      %p45 = por %p43, %p44
      %p46 = scmp.ne.s32.totalorder %s38, %s40
      %p47 = scmp.eq.s32.totalorder %s14, 1
      %p48 = por %p46, %p47
      %p49 = scmp.ne.s32.totalorder %s40, %s41
      %p50 = scmp.eq.s32.totalorder %s14, 0
      %p51 = por %p49, %p50
      %p52 = scmp.ne.s32.totalorder %s40, %s41
      %p53 = scmp.eq.s32.totalorder %s15, 1
      %p54 = por %p52, %p53
      %p56 = scmp.ne.s32.totalorder %s41, %s55
      %p57 = scmp.eq.s32.totalorder %s15, 0
      %p58 = por %p56, %p57
      %p59 = scmp.le.s32.totalorder 1, %s9
      %p60 = scmp.lt.s32.totalorder %s9, 3
      %p61 = pnand %p59, %p60
      %p62 = pneg %p61
      // Predicated region
      $region9: #{tpu_custom_call.1} parent=5 // pred_check
        _
      $region10: #{tpu_custom_call.1} parent=5 // pred_check_branch
        %64 = sbr.rel (%p61) target = $region12
      $region11: #{tpu_custom_call.1} parent=5 // pred_region
        %s65 = ssub.s32 %s9, 1
        // Predicated region
        $region13: #{tpu_custom_call.1} parent=11 // pred_check
          %p66 = pneg %p30
        $region14: #{tpu_custom_call.1} parent=11 // pred_check_branch
          %68 = sbr.rel (%p66) target = $region16
        $region15: #{tpu_custom_call.1} parent=11 // pred_region
          %s70 = ssub.s32 128, 128
          %71 = vsyncadd [#allocation3], %s70
          %s73 = sshll.u32 [#allocation2], 4
          %s74 = int_to_ptr.vmem [resolvable:$true] %s73
          %76 = dma.hbm_to_vmem [thread:$0]  %s0, 128, %s74, [#allocation3]
        $region16: #{tpu_custom_call.1} parent=11 // pred_fallthru
          _
      $region12: #{tpu_custom_call.1} parent=5 // pred_fallthru
        _
      %p77 = scmp.lt.s32.totalorder %s9, 2
      // Predicated region
      $region17: #{tpu_custom_call.1} parent=5 // pred_check
        %p78 = pneg %p77
      $region18: #{tpu_custom_call.1} parent=5 // pred_check_branch
        %80 = sbr.rel (%p78) target = $region20
      $region19: #{tpu_custom_call.1} parent=5 // pred_region
        _
      $region20: #{tpu_custom_call.1} parent=5 // pred_fallthru
        _
      %p81 = scmp.le.s32.totalorder 1, %s9
      %p82 = scmp.lt.s32.totalorder %s9, 3
      %p83 = pnand %p81, %p82
      %p84 = pneg %p83
      // Predicated region
      $region21: #{tpu_custom_call.1} parent=5 // pred_check
        _
      $region22: #{tpu_custom_call.1} parent=5 // pred_check_branch
        %86 = sbr.rel (%p83) target = $region24
      $region23: #{tpu_custom_call.1} parent=5 // pred_region
        %s87 = ssub.s32 %s9, 1
        // Predicated region
        $region25: #{tpu_custom_call.1} parent=23 // pred_check
          %p88 = pneg %p30
        $region26: #{tpu_custom_call.1} parent=23 // pred_check_branch
          %90 = sbr.rel (%p88) target = $region28
        $region27: #{tpu_custom_call.1} parent=23 // pred_region
          %91 = dma.done [#allocation3], 128
        $region28: #{tpu_custom_call.1} parent=23 // pred_fallthru
          _
        %p92 = pneg %p30
        %p93 = pneg %p27
        %p94 = pneg %p51
        %p95 = pneg %p48
        %v96 = vld [vmem:[#allocation2] sm:$0xff]
        %v97 = vadd.f32 %v96, 1.0
        %98 = vst [vmem:[#allocation5] sm:$0xff] %v97
        // Predicated region
        $region29: #{tpu_custom_call.1} parent=23 // pred_check
          %p99 = pneg %p48
        $region30: #{tpu_custom_call.1} parent=23 // pred_check_branch
          %101 = sbr.rel (%p99) target = $region32
        $region31: #{tpu_custom_call.1} parent=23 // pred_region
          %s103 = ssub.s32 128, 128
          %104 = vsyncadd [#allocation4], %s103
          %s106 = sshll.u32 [#allocation5], 4
          %s107 = int_to_ptr.vmem [resolvable:$true] %s106
          %109 = dma.vmem_to_hbm [thread:$0]  %s107, 128, %s1, [#allocation4]
        $region32: #{tpu_custom_call.1} parent=23 // pred_fallthru
          _
        // Predicated region
        $region33: #{tpu_custom_call.1} parent=23 // pred_check
          %p110 = pneg %p48
        $region34: #{tpu_custom_call.1} parent=23 // pred_check_branch
          %112 = sbr.rel (%p110) target = $region36
        $region35: #{tpu_custom_call.1} parent=23 // pred_region
          %113 = dma.done [#allocation4], 128
        $region36: #{tpu_custom_call.1} parent=23 // pred_fallthru
          _
      $region24: #{tpu_custom_call.1} parent=5 // pred_fallthru
        _
      %p114 = scmp.le.s32.totalorder 2, %s9
      // Predicated region
      $region37: #{tpu_custom_call.1} parent=5 // pred_check
        %p115 = pneg %p114
      $region38: #{tpu_custom_call.1} parent=5 // pred_check_branch
        %117 = sbr.rel (%p115) target = $region40
      $region39: #{tpu_custom_call.1} parent=5 // pred_region
        %s118 = ssub.s32 %s9, 2
      $region40: #{tpu_custom_call.1} parent=5 // pred_fallthru
        _
    $region6: #{tpu_custom_call.1} parent=1 // loop_footer
      %s13 = sadd.s32 1, %s9
    $region7: #{tpu_custom_call.1} parent=1 // loop_footer_branch
      %8 = sbr.rel target = $region3
    $region8: #{tpu_custom_call.1} parent=1 // loop_exit
      _
    %119 = vsyncpa [#allocation3], 1
    %s120 = scalar_lea.sflag [#allocation3], 1
    %121 = vsyncpa %s120, 1
    %122 = vsyncpa [#allocation4], 1
    %s123 = scalar_lea.sflag [#allocation4], 1
    %124 = vsyncpa %s123, 1

// kernel: tpu_custom_call.1
$region0: #{tpu_custom_call.1}
  #allocation0 [shape = 'u32[]', space=smem, size = 0x4, offset = 0x4, fixed_abs, tag = 'smem constant byte address 0x4 - core index']
  #allocation1 [shape = 'u32[144,128]{1,0:T(1,128)}', space=vmem, size = 0x12000, scoped, tag = 'internal scratch']
  %s0 = inlined_call_operand.vmem [shape: bf16[2,4,192], index: 0, kind: input, shape index: {}]
  %s1 = inlined_call_operand.vmem [shape: bf16[192,32], index: 1, kind: input, shape index: {}]
  %s2 = inlined_call_operand.vmem [shape: f32[1,32], index: 2, kind: input, shape index: {}]
  %s3 = inlined_call_operand.vmem [shape: f32[1,16,32], index: 3, kind: input, shape index: {}]
  %s4 = inlined_call_operand.hbm [shape: bf16[2,16,32], index: 4, kind: output, shape index: {}]
  %s5 = sld [smem:[#allocation0]]
  $region26: #{tpu_custom_call.1} parent=0
    _
  %s7 = ssub.s32 1, %s5
  %s8 = scalar_select 0, %s7, %s5
  $region1: #{tpu_custom_call.1} parent=0
    #allocation2 [shape = 'u8[8192]{0}', space=vmem, size = 0x2000, scoped, tag = 'output window, operand 0, single buffered']
    #allocation3 [shape = 's32[1]{0}', space=sflag, size = 0x4, scoped, tag = 'scoped memory for tpu_custom_call.1']
    %9 = vsyncpa [#allocation3], 0
    // Predicated region
    $region2: #{tpu_custom_call.1} parent=1 // pred_check
      _
    $region3: #{tpu_custom_call.1} parent=1 // pred_check_branch
      %11 = sbr.rel (0) target = $region5
    $region4: #{tpu_custom_call.1} parent=1 // pred_region
      _
    $region5: #{tpu_custom_call.1} parent=1 // pred_fallthru
      _
    // Predicated region
    $region6: #{tpu_custom_call.1} parent=1 // pred_check
      _
    $region7: #{tpu_custom_call.1} parent=1 // pred_check_branch
      %13 = sbr.rel (0) target = $region9
    $region8: #{tpu_custom_call.1} parent=1 // pred_region
      _
    $region9: #{tpu_custom_call.1} parent=1 // pred_fallthru
      _
    // Predicated region
    $region10: #{tpu_custom_call.1} parent=1 // pred_check
      _
    $region11: #{tpu_custom_call.1} parent=1 // pred_check_branch
      %15 = sbr.rel (0) target = $region13
    $region12: #{tpu_custom_call.1} parent=1 // pred_region
      _
    $region13: #{tpu_custom_call.1} parent=1 // pred_fallthru
      _
    // Predicated region
    $region14: #{tpu_custom_call.1} parent=1 // pred_check
      _
    $region15: #{tpu_custom_call.1} parent=1 // pred_check_branch
      %17 = sbr.rel (0) target = $region17
    $region16: #{tpu_custom_call.1} parent=1 // pred_region
      _
    $region17: #{tpu_custom_call.1} parent=1 // pred_fallthru
      _
    %v19 = vld [vmem:[%s0] sm:$0xf]
    %v20 = vld [vmem:[%s0 + $0x4] sm:$0xf]
    %v21 = vld [vmem:[%s1] sm:$0xf]
    %v22 = vld [vmem:[%s1 + $0x4] sm:$0xf]
    %v23 = vld [vmem:[%s1 + $0x8] sm:$0xf]
    %v24 = vld [vmem:[%s1 + $0xc] sm:$0xf]
    %v25 = vld [vmem:[%s1 + $0x10] sm:$0xf]
    %v26 = vld [vmem:[%s1 + $0x14] sm:$0xf]
    %v27 = vld [vmem:[%s1 + $0x18] sm:$0xf]
    %v28 = vld [vmem:[%s1 + $0x1c] sm:$0xf]
    %v29 = vld [vmem:[%s1 + $0x20] sm:$0xf]
    %v30 = vld [vmem:[%s1 + $0x24] sm:$0xf]
    %v31 = vld [vmem:[%s1 + $0x28] sm:$0xf]
    %v32 = vld [vmem:[%s1 + $0x2c] sm:$0xf]
    %v33 = vld [vmem:[%s1 + $0x30] sm:$0xf]
    %v34 = vld [vmem:[%s1 + $0x34] sm:$0xf]
    %v35 = vld [vmem:[%s1 + $0x38] sm:$0xf]
    %v36 = vld [vmem:[%s1 + $0x3c] sm:$0xf]
    %v37 = vld [vmem:[%s1 + $0x40] sm:$0xf]
    %v38 = vld [vmem:[%s1 + $0x44] sm:$0xf]
    %v39 = vld [vmem:[%s1 + $0x48] sm:$0xf]
    %v40 = vld [vmem:[%s1 + $0x4c] sm:$0xf]
    %v41 = vld [vmem:[%s1 + $0x50] sm:$0xf]
    %v42 = vld [vmem:[%s1 + $0x54] sm:$0xf]
    %v43 = vld [vmem:[%s1 + $0x58] sm:$0xf]
    %v44 = vld [vmem:[%s1 + $0x5c] sm:$0xf]
    %v45 = vld [vmem:[%s2] sm:$0x1]
    %v47 = vlaneseq
    %v48 = vshrl.u32 %v47, 7
    %v49 = vsub.s32 0, %v48
    %v50 = vrot.slane %v45, %v49
    %v54 = vcombine.low %v19, %v20
    %v56 = vunpack.c.l.s4 1983009808
    %v57 = vunpack.c.0.s8 %v56
    %v58 = vlaneseq
    %v59 = vshrl.u32 %v58, 7
    %v60 = vsub.s32 %v57, %v59
    %v61 = vrot.slane %v54, %v60
    %v62 = vcombine.high %v61, %v61
    %v88 = vunpack.c.l.b16 %v21
    %v89 = vunpack.c.l.b16 %v22
    %v90 = vunpack.c.l.b16 %v23
    %v91 = vunpack.c.l.b16 %v24
    %v92 = vunpack.c.l.b16 %v25
    %v93 = vunpack.c.l.b16 %v26
    %v94 = vunpack.c.l.b16 %v27
    %v95 = vunpack.c.l.b16 %v28
    %v96 = vunpack.c.l.b16 %v29
    %v97 = vunpack.c.l.b16 %v30
    %v98 = vunpack.c.l.b16 %v31
    %v99 = vunpack.c.l.b16 %v32
    %v100 = vunpack.c.l.b16 %v33
    %v101 = vunpack.c.l.b16 %v34
    %v102 = vunpack.c.l.b16 %v35
    %v103 = vunpack.c.l.b16 %v36
    %v104 = vunpack.c.l.b16 %v37
    %v105 = vunpack.c.l.b16 %v38
    %v106 = vunpack.c.l.b16 %v39
    %v107 = vunpack.c.l.b16 %v40
    %v108 = vunpack.c.l.b16 %v41
    %v109 = vunpack.c.l.b16 %v42
    %v110 = vunpack.c.l.b16 %v43
    %v111 = vunpack.c.l.b16 %v44
    %v112 = vpack.c.b16 %v89, %v88
    %v113 = vpack.c.b16 %v91, %v90
    %v114 = vpack.c.b16 %v93, %v92
    %v115 = vpack.c.b16 %v95, %v94
    %v116 = vpack.c.b16 %v97, %v96
    %v117 = vpack.c.b16 %v99, %v98
    %v118 = vpack.c.b16 %v101, %v100
    %v119 = vpack.c.b16 %v103, %v102
    %v120 = vpack.c.b16 %v105, %v104
    %v121 = vpack.c.b16 %v107, %v106
    %v122 = vpack.c.b16 %v109, %v108
    %v123 = vpack.c.b16 %v111, %v110
    %vm136 = vcmask 523264
    %v138 = vsel %vm136, %v62, 0
    %140 = vmatprep.subr.bf16.mxu0 0
    %141 = vmatpush1.bf16.msra.mxu0 %v112
    %142 = vmatprep.subr.bf16.mxu0 0
    %143 = vmatpush1.bf16.msra.mxu0 %v113
    %144 = vmatprep.subr.bf16.mxu0 0
    %145 = vmatpush1.bf16.msra.mxu0 %v114
    %146 = vmatprep.subr.bf16.mxu0 0
    %147 = vmatpush1.bf16.msra.mxu0 %v115
    %148 = vmatprep.subr.bf16.mxu0 0
    %149 = vmatpush1.bf16.msra.mxu0 %v116
    %150 = vmatprep.subr.bf16.mxu0 0
    %151 = vmatpush1.bf16.msra.mxu0 %v117
    %152 = vmatprep.subr.bf16.mxu0 0
    %153 = vmatpush1.bf16.msra.mxu0 %v118
    %154 = vmatprep.subr.bf16.mxu0 0
    %155 = vmatpush1.bf16.msra.mxu0 %v119
    %156 = vmatprep.subr.bf16.mxu0 0
    %157 = vmatpush1.bf16.msra.mxu0 %v120
    %158 = vmatprep.subr.bf16.mxu0 0
    %159 = vmatpush1.bf16.msra.mxu0 %v121
    %160 = vmatprep.subr.bf16.mxu0 0
    %161 = vmatpush1.bf16.msra.mxu0 %v122
    %162 = vmatprep.subr.bf16.mxu0 0
    %163 = vmatpush1.bf16.msra.mxu0 %v123
    %164 = vmatprep.subr.bf16.mxu0 0
    %165 = vmatpush1.bf16.msra.mxu0 0
    %166 = vmatprep.subr.bf16.mxu0 0
    %167 = vmatpush1.bf16.msra.mxu0 0
    %168 = vmatprep.subr.bf16.mxu0 0
    %169 = vmatpush1.bf16.msra.mxu0 0
    %170 = vmatprep.subr.bf16.mxu0 0
    %171 = vmatpush1.bf16.msra.mxu0 0
    %172 = vmatprep.mubr.bf16.mxu0 %v138
    %173 = vmatmul.mubr.bf16.gmra.mrb[0].mxu0 %v61
    %v174 = vpop.f32.mrb[0].mxu0
    %v175 = vadd.f32 %v50, %v174
    %v176 = vpop.f32.mrb[0].mxu0
    %v177 = vpop.f32.mrb[0].mxu0
    %v178 = vpop.f32.mrb[0].mxu0
    %179 = vdwg.mxu0
    %v181 = vcombine.high %v175, %v175
    %v183 = vld [vmem:[%s3] sm:$0xff]
    %vm184 = vcmask 257024
    %185 = vst.msk [vmem:[#allocation2] sm:$0xf] %vm184, 0
    %186 = vst.msk [vmem:[#allocation2 + $0x4] sm:$0xf] %vm184, 0
    %187 = vst.msk [vmem:[#allocation2 + $0x8] sm:$0xf] %vm184, 0
    %188 = vst.msk [vmem:[#allocation2 + $0xc] sm:$0xf] %vm184, 0
    %v189 = vpack.c.bf16 %v183, %v183
    %vm190 = vcmask 253952
    %vm191 = vsmask.f32 256
    %vm192 = vmand %vm190, %vm191
    %v193 = vld [vmem:[#allocation2] sm:$0x1]
    %v194 = vsel %vm192, %v189, %v193
    %195 = vst [vmem:[#allocation2] sm:$0x1] %v194
    %v196 = vld [vmem:[#allocation2 + $0x8] sm:$0x1]
    %v197 = vsel %vm192, %v189, %v196
    %198 = vst [vmem:[#allocation2 + $0x8] sm:$0x1] %v197
    %v200 = vcombine.high %v183, %v183
    %vm201 = vcmask 1042432
    %vm202 = vcmask 1046532
    %vm203 = vmor %vm201, %vm202
    %v204 = vrot.slane %v183, 5
    %v205 = vrot.slane %v204, 4
    %v206 = vrot.slane %v200, 5
    %v207 = vsel %vm203, %v205, %v206
    %v209 = vadd.f32 %v175, %v207
    %v210 = vadd.f32 %v181, %v207
    %v211 = vpack.c.bf16 %v209, %v209
    %v212 = vpack.c.bf16 %v210, %v210
    %v215 = vunpack.c.l.b16 %v211
    %v216 = vunpack.c.l.b16 %v212
    %v217 = vpack.c.b16 %v215, %v215
    %v218 = vpack.c.b16 %v216, %v216
    %v220 = vshrl.u32 %v217, 16
    %v222 = vrot.slane %v220, 7
    %v223 = vshll.u32 %v217, 16
    %v225 = vor.u32 %v222, %v223
    %v227 = vshrl.u32 %v218, 16
    %v229 = vrot.slane %v227, 7
    %v230 = vshll.u32 %v218, 16
    %v232 = vor.u32 %v229, %v230
    %vm235 = vcmask 256000
    %vm236 = vsmask.f32 2306
    %vm237 = vmand %vm235, %vm236
    %v238 = vld [vmem:[#allocation2] sm:$0x7]
    %v239 = vsel %vm237, %v225, %v238
    %240 = vst [vmem:[#allocation2] sm:$0x7] %v239
    %v241 = vld [vmem:[#allocation2 + $0x8] sm:$0x7]
    %v242 = vsel %vm237, %v232, %v241
    %243 = vst [vmem:[#allocation2 + $0x8] sm:$0x7] %v242
    // Predicated region
    $region18: #{tpu_custom_call.1} parent=1 // pred_check
      _
    $region19: #{tpu_custom_call.1} parent=1 // pred_check_branch
      %245 = sbr.rel (0) target = $region21
    $region20: #{tpu_custom_call.1} parent=1 // pred_region
      %s247 = ssub.s32 256, 256
      %248 = vsyncadd [#allocation3], %s247
      %s249 = sshll.u32 [#allocation2], 4
      %s250 = int_to_ptr.vmem [resolvable:$true] %s249
      %255 = dma.vmem_to_hbm [thread:$0]  %s250, 256, %s4, [#allocation3], 64, 64, 4
    $region21: #{tpu_custom_call.1} parent=1 // pred_fallthru
      _
    // Predicated region
    $region22: #{tpu_custom_call.1} parent=1 // pred_check
      _
    $region23: #{tpu_custom_call.1} parent=1 // pred_check_branch
      %257 = sbr.rel (0) target = $region25
    $region24: #{tpu_custom_call.1} parent=1 // pred_region
      %258 = dma.done [#allocation3], 256
    $region25: #{tpu_custom_call.1} parent=1 // pred_fallthru
      _
    %259 = vsyncpa [#allocation3], 1

</llo_original>
